<compile_context>
chip_gen: v6e
topology: v6e:2x2x1
jax: 0.10.0
libtpu: 0.0.40
codegen_flags: <defaults>
</compile_context>

<pallas_src>
import functools

import jax
import jax.numpy as jnp
from jax.experimental import pallas as pl
from jax.experimental.pallas import tpu as pltpu


def _distill_kernel(s_ref, t_ref, y_ref, o_ref, soft_acc, hard_acc, *,
                    alpha, inv_temperature, temperature, batch, classes,
                    row_block, blocks_per_core, needs_mask):
    p = pl.program_id(0)                 # "parallel" axis (megacore / v7x split)
    i = pl.program_id(1)                 # "arbitrary" reduction axis over batch
    last = pl.num_programs(1) - 1

    @pl.when(i == 0)
    def _init():
        soft_acc[...] = jnp.zeros_like(soft_acc)
        hard_acc[...] = jnp.zeros_like(hard_acc)

    s = s_ref[...].astype(jnp.float32)   # student probabilities (BCE input, in (0,1))
    t = t_ref[...].astype(jnp.float32)   # teacher logits
    y = y_ref[...].astype(jnp.float32)   # labels (hard or soft)

    # ---- teacher / student: T-scaled, max-shifted logits and row exp-sums ----
    tt = t * inv_temperature
    tt = tt - jnp.max(tt, axis=1, keepdims=True)
    te = jnp.exp(tt)
    t_sum = jnp.sum(te, axis=1, keepdims=True)          # (TB, 1)

    ss = s * inv_temperature
    ss = ss - jnp.max(ss, axis=1, keepdims=True)
    s_sum = jnp.sum(jnp.exp(ss), axis=1, keepdims=True)  # (TB, 1)

    # ---- KLDiv row partial (algebraic form; no p_t / log-softmax arrays) ----
    # sum_c p_t*(log p_t - log p_s) = (sum_c e_t*(tt-ss))/t_sum + log(s_sum) - log(t_sum)
    dot_row = jnp.sum(te * (tt - ss), axis=1, keepdims=True)
    kl_row = dot_row * (1.0 / t_sum) + (jnp.log(s_sum) - jnp.log(t_sum))

    # ---- BCE row partial (torch.nn.BCELoss semantics: soft labels, log clamp -100) ----
    log_s = jnp.maximum(jnp.log(jnp.maximum(s, 1e-38)), -100.0)
    log_1ms = jnp.maximum(jnp.log(jnp.maximum(1.0 - s, 1e-38)), -100.0)
    bce_row = jnp.sum(-(y * log_s + (1.0 - y) * log_1ms), axis=1, keepdims=True)

    if needs_mask:
        # Rows past B (padded last tile / phantom blocks from the 2-core split):
        # zero their contributions so garbage (possibly NaN) never accumulates.
        blk = p * blocks_per_core + i
        rows = blk * row_block + jax.lax.broadcasted_iota(jnp.int32, (row_block, 1), 0)
        valid = rows < batch
        kl_row = jnp.where(valid, kl_row, 0.0)
        bce_row = jnp.where(valid, bce_row, 0.0)

    soft_acc[...] += kl_row
    hard_acc[...] += bce_row

    # ---- finalize once per core: one cross-sublane reduce + global scaling ----
    @pl.when(i == last)
    def _finalize():
        soft = jnp.sum(soft_acc[...]) * (temperature * temperature / batch)
        hard = jnp.sum(hard_acc[...]) * (1.0 / (batch * classes))
        partial = alpha * hard + (1.0 - alpha) * soft
        o_ref[...] = partial + jnp.zeros(o_ref.shape, jnp.float32)


def _choose_row_block(batch, classes, itemsize, vmem_budget_bytes, max_row_block):
    """Largest row tile (multiple of 8) whose double-buffered input working set
    (3 inputs x 2 pipeline buffers) fits in the VMEM budget; capped at
    max_row_block (diminishing returns past ~512 rows) and at the batch size."""
    bytes_per_row = 3 * 2 * classes * itemsize
    tb = max(8, (vmem_budget_bytes // max(bytes_per_row, 1)) // 8 * 8)
    tb = min(tb, max_row_block)
    if batch <= 8:
        return int(batch)                     # block == full batch dim is always legal
    return int(min(tb, (batch // 8) * 8))     # multiple of 8, never larger than B


def distillation_loss(student_logits, teacher_logits, true_labels,
                      alpha=0.5, temperature=3.0,
                      vmem_budget_bytes=24 * 1024 * 1024,
                      max_row_block=512):
    """Pallas TPU implementation of DistillationLoss.forward. Returns scalar f32."""
    B, C = student_logits.shape
    itemsize = jnp.dtype(student_logits.dtype).itemsize
    tb = _choose_row_block(B, C, itemsize, vmem_budget_bytes, max_row_block)
    nb = pl.cdiv(B, tb)

    # Split batch blocks across v7x's two TensorCores whenever there is more than
    # one block (phantom padded blocks are masked); no-op on single-core v5e/v6e.
    num_cores = 2 if nb >= 2 else 1
    bpc = pl.cdiv(nb, num_cores)
    grid = (num_cores, bpc)
    needs_mask = (B % tb != 0) or (num_cores * bpc != nb)

    def in_map(p, i):
        return (p * bpc + i, 0)

    kernel = functools.partial(
        _distill_kernel,
        alpha=float(alpha),
        inv_temperature=float(1.0 / temperature),
        temperature=float(temperature),
        batch=int(B),
        classes=int(C),
        row_block=int(tb),
        blocks_per_core=int(bpc),
        needs_mask=bool(needs_mask),
    )

    # VMEM: 3 double-buffered input tiles + 2 (TB,1) accumulators + output (+ headroom).
    needed = 3 * 2 * tb * C * itemsize + 2 * tb * 128 * 4 + num_cores * 8 * 128 * 4
    vmem_limit = int(min(max(needed + (8 << 20), 32 << 20), 60 << 20))

    out = pl.pallas_call(
        kernel,
        out_shape=jax.ShapeDtypeStruct((num_cores * 8, 128), jnp.float32),
        grid_spec=pltpu.PrefetchScalarGridSpec(
            num_scalar_prefetch=0,
            grid=grid,
            in_specs=[
                pl.BlockSpec((tb, C), in_map),
                pl.BlockSpec((tb, C), in_map),
                pl.BlockSpec((tb, C), in_map),
            ],
            out_specs=pl.BlockSpec((8, 128), lambda p, i: (p, 0)),
            scratch_shapes=[
                pltpu.VMEM((tb, 1), jnp.float32),   # KL row-partial accumulator
                pltpu.VMEM((tb, 1), jnp.float32),   # BCE row-partial accumulator
            ],
        ),
        compiler_params=pltpu.CompilerParams(
            dimension_semantics=("parallel", "arbitrary"),
            vmem_limit_bytes=vmem_limit,
        ),
    )(student_logits, teacher_logits, true_labels)

    return jnp.sum(out[::8, 0])   # sum the per-core partial losses


def _reference(student_logits, teacher_logits, true_labels, alpha=0.5, temperature=3.0):
    T = temperature
    B = student_logits.shape[0]
    tp = jax.nn.softmax(teacher_logits / T, axis=1)
    slp = jax.nn.log_softmax(student_logits / T, axis=1)
    soft = jnp.sum(tp * (jnp.log(tp) - slp)) / B * T * T
    s = student_logits
    hard = jnp.mean(-(true_labels * jnp.log(s) + (1 - true_labels) * jnp.log(1 - s)))
    return alpha * hard + (1 - alpha) * soft


if __name__ == "__main__":
    key = jax.random.PRNGKey(0)
    keys = jax.random.split(key, 9)

    # Test 1: B fits in a single row tile (single batch block, 1-core grid path).
    B1, C1 = 8, 16
    s1 = jax.nn.sigmoid(jax.random.normal(keys[0], (B1, C1), dtype=jnp.float32))
    t1 = jax.random.normal(keys[1], (B1, C1), dtype=jnp.float32)
    y1 = jax.random.bernoulli(keys[2], 0.5, (B1, C1)).astype(jnp.float32)
    loss1 = distillation_loss(s1, t1, y1, alpha=0.5, temperature=3.0)
    jax.block_until_ready(loss1)
    ref1 = _reference(s1, t1, y1, alpha=0.5, temperature=3.0)
    assert jnp.allclose(loss1, ref1, rtol=1e-5, atol=1e-5), (loss1, ref1)

    # Test 2: B not a multiple of the row tile (masking + even 2-core split).
    B2, C2 = 20, 24
    s2 = jax.nn.sigmoid(jax.random.normal(keys[3], (B2, C2), dtype=jnp.float32))
    t2 = jax.random.normal(keys[4], (B2, C2), dtype=jnp.float32)
    y2 = jax.random.bernoulli(keys[5], 0.5, (B2, C2)).astype(jnp.float32)
    loss2 = distillation_loss(s2, t2, y2, alpha=0.3, temperature=2.0)
    jax.block_until_ready(loss2)
    ref2 = _reference(s2, t2, y2, alpha=0.3, temperature=2.0)
    assert jnp.allclose(loss2, ref2, rtol=1e-5, atol=1e-5), (loss2, ref2)

    # Test 3: odd block count -> uneven 2-core split with a phantom (masked) block.
    B3, C3 = 40, 16
    s3 = jax.nn.sigmoid(jax.random.normal(keys[6], (B3, C3), dtype=jnp.float32))
    t3 = jax.random.normal(keys[7], (B3, C3), dtype=jnp.float32)
    y3 = jax.random.bernoulli(keys[8], 0.5, (B3, C3)).astype(jnp.float32)
    loss3 = distillation_loss(s3, t3, y3, alpha=0.7, temperature=4.0, max_row_block=16)
    jax.block_until_ready(loss3)
    ref3 = _reference(s3, t3, y3, alpha=0.7, temperature=4.0)
    assert jnp.allclose(loss3, ref3, rtol=1e-5, atol=1e-5), (loss3, ref3)

    print("KERNEL_OK")
</pallas_src>

<mosaic_0001>
module attributes {stable_mosaic.version = 11 : i64} {
  func.func @_distill_kernel(%arg0: i32, %arg1: i32, %arg2: memref<8x16xf32, #tpu.memory_space<vmem>>, %arg3: memref<8x16xf32, #tpu.memory_space<vmem>>, %arg4: memref<8x16xf32, #tpu.memory_space<vmem>>, %arg5: memref<8x128xf32, #tpu.memory_space<vmem>>, %arg6: memref<8x1xf32, #tpu.memory_space<vmem>>, %arg7: memref<8x1xf32, #tpu.memory_space<vmem>>) attributes {dimension_semantics = [#tpu.dimension_semantics<parallel>, #tpu.dimension_semantics<arbitrary>], iteration_bounds = array<i64: 1, 1>, scalar_prefetch = 0 : i64, scratch_operands = 2 : i64, tpu.core_type = #tpu.core_type<tc>, window_params = [{transform_indices = @transform_0, window_bounds = array<i64: 8, 16>}, {transform_indices = @transform_1, window_bounds = array<i64: 8, 16>}, {transform_indices = @transform_2, window_bounds = array<i64: 8, 16>}, {transform_indices = @transform_3, window_bounds = array<i64: 8, 128>}]} {
    %c0_i32 = arith.constant 0 : i32
    %0 = arith.cmpi eq, %arg1, %c0_i32 : i32
    %1 = arith.extui %0 : i1 to i32
    %c0_i32_0 = arith.constant 0 : i32
    %2 = arith.cmpi ne, %1, %c0_i32_0 : i32
    scf.if %2 {
      %cst_31 = arith.constant 0.000000e+00 : f32
      %65 = vector.broadcast %cst_31 : f32 to vector<8x1xf32>
      %c0_32 = arith.constant 0 : index
      %c0_33 = arith.constant 0 : index
      %66 = vector.load %arg6[%c0_32, %c0_33] : memref<8x1xf32, #tpu.memory_space<vmem>>, vector<8x1xf32>
      tpu.vector_store %arg6[%c0_32, %c0_33], %65 {strides = array<i32>} : memref<8x1xf32, #tpu.memory_space<vmem>>, vector<8x1xf32>,
      %cst_34 = arith.constant 0.000000e+00 : f32
      %67 = vector.broadcast %cst_34 : f32 to vector<8x1xf32>
      %c0_35 = arith.constant 0 : index
      %c0_36 = arith.constant 0 : index
      %68 = vector.load %arg7[%c0_35, %c0_36] : memref<8x1xf32, #tpu.memory_space<vmem>>, vector<8x1xf32>
      tpu.vector_store %arg7[%c0_35, %c0_36], %67 {strides = array<i32>} : memref<8x1xf32, #tpu.memory_space<vmem>>, vector<8x1xf32>,
    } else {
    }
    %c0 = arith.constant 0 : index
    %c0_1 = arith.constant 0 : index
    %3 = vector.load %arg2[%c0, %c0_1] : memref<8x16xf32, #tpu.memory_space<vmem>>, vector<8x16xf32>
    %c0_2 = arith.constant 0 : index
    %c0_3 = arith.constant 0 : index
    %4 = vector.load %arg3[%c0_2, %c0_3] : memref<8x16xf32, #tpu.memory_space<vmem>>, vector<8x16xf32>
    %c0_4 = arith.constant 0 : index
    %c0_5 = arith.constant 0 : index
    %5 = vector.load %arg4[%c0_4, %c0_5] : memref<8x16xf32, #tpu.memory_space<vmem>>, vector<8x16xf32>
    %cst = arith.constant 0.333333343 : f32
    %6 = vector.broadcast %cst : f32 to vector<8x16xf32>
    %7 = arith.mulf %4, %6 : vector<8x16xf32>
    %cst_6 = arith.constant dense<0xFF800000> : vector<8xf32>
    %8 = vector.multi_reduction <maximumf>, %7, %cst_6 [1] : vector<8x16xf32> to vector<8xf32>
    %9 = vector.shape_cast %8 : vector<8xf32> to vector<8x1xf32>
    %10 = vector.broadcast %9 : vector<8x1xf32> to vector<8x16xf32>
    %11 = arith.subf %7, %10 : vector<8x16xf32>
    %12 = math.exp %11 : vector<8x16xf32>
    %cst_7 = arith.constant dense<0.000000e+00> : vector<8xf32>
    %13 = vector.multi_reduction <add>, %12, %cst_7 [1] : vector<8x16xf32> to vector<8xf32>
    %14 = vector.shape_cast %13 : vector<8xf32> to vector<8x1xf32>
    %cst_8 = arith.constant 0.333333343 : f32
    %15 = vector.broadcast %cst_8 : f32 to vector<8x16xf32>
    %16 = arith.mulf %3, %15 : vector<8x16xf32>
    %cst_9 = arith.constant dense<0xFF800000> : vector<8xf32>
    %17 = vector.multi_reduction <maximumf>, %16, %cst_9 [1] : vector<8x16xf32> to vector<8xf32>
    %18 = vector.shape_cast %17 : vector<8xf32> to vector<8x1xf32>
    %19 = vector.broadcast %18 : vector<8x1xf32> to vector<8x16xf32>
    %20 = arith.subf %16, %19 : vector<8x16xf32>
    %21 = math.exp %20 : vector<8x16xf32>
    %cst_10 = arith.constant dense<0.000000e+00> : vector<8xf32>
    %22 = vector.multi_reduction <add>, %21, %cst_10 [1] : vector<8x16xf32> to vector<8xf32>
    %23 = vector.shape_cast %22 : vector<8xf32> to vector<8x1xf32>
    %24 = arith.subf %11, %20 : vector<8x16xf32>
    %25 = arith.mulf %12, %24 : vector<8x16xf32>
    %cst_11 = arith.constant dense<0.000000e+00> : vector<8xf32>
    %26 = vector.multi_reduction <add>, %25, %cst_11 [1] : vector<8x16xf32> to vector<8xf32>
    %27 = vector.shape_cast %26 : vector<8xf32> to vector<8x1xf32>
    %cst_12 = arith.constant 1.000000e+00 : f32
    %28 = vector.broadcast %cst_12 : f32 to vector<8x1xf32>
    %29 = arith.divf %28, %14 : vector<8x1xf32>
    %30 = arith.mulf %27, %29 : vector<8x1xf32>
    %31 = math.log %23 : vector<8x1xf32>
    %32 = math.log %14 : vector<8x1xf32>
    %33 = arith.subf %31, %32 : vector<8x1xf32>
    %34 = arith.addf %30, %33 : vector<8x1xf32>
    %cst_13 = arith.constant 9.99999935E-39 : f32
    %35 = vector.broadcast %cst_13 : f32 to vector<8x16xf32>
    %36 = arith.maximumf %3, %35 : vector<8x16xf32>
    %37 = math.log %36 : vector<8x16xf32>
    %cst_14 = arith.constant -1.000000e+02 : f32
    %38 = vector.broadcast %cst_14 : f32 to vector<8x16xf32>
    %39 = arith.maximumf %37, %38 : vector<8x16xf32>
    %cst_15 = arith.constant 1.000000e+00 : f32
    %40 = vector.broadcast %cst_15 : f32 to vector<8x16xf32>
    %41 = arith.subf %40, %3 : vector<8x16xf32>
    %cst_16 = arith.constant 9.99999935E-39 : f32
    %42 = vector.broadcast %cst_16 : f32 to vector<8x16xf32>
    %43 = arith.maximumf %41, %42 : vector<8x16xf32>
    %44 = math.log %43 : vector<8x16xf32>
    %cst_17 = arith.constant -1.000000e+02 : f32
    %45 = vector.broadcast %cst_17 : f32 to vector<8x16xf32>
    %46 = arith.maximumf %44, %45 : vector<8x16xf32>
    %47 = arith.mulf %5, %39 : vector<8x16xf32>
    %cst_18 = arith.constant 1.000000e+00 : f32
    %48 = vector.broadcast %cst_18 : f32 to vector<8x16xf32>
    %49 = arith.subf %48, %5 : vector<8x16xf32>
    %50 = arith.mulf %49, %46 : vector<8x16xf32>
    %51 = arith.addf %47, %50 : vector<8x16xf32>
    %cst_19 = arith.constant 0.000000e+00 : f32
    %52 = vector.broadcast %cst_19 : f32 to vector<8x16xf32>
    %53 = arith.subf %52, %51 : vector<8x16xf32>
    %cst_20 = arith.constant dense<0.000000e+00> : vector<8xf32>
    %54 = vector.multi_reduction <add>, %53, %cst_20 [1] : vector<8x16xf32> to vector<8xf32>
    %55 = vector.shape_cast %54 : vector<8xf32> to vector<8x1xf32>
    %c0_21 = arith.constant 0 : index
    %c0_22 = arith.constant 0 : index
    %56 = vector.load %arg6[%c0_21, %c0_22] : memref<8x1xf32, #tpu.memory_space<vmem>>, vector<8x1xf32>
    %57 = arith.addf %56, %34 : vector<8x1xf32>
    %c0_23 = arith.constant 0 : index
    %c0_24 = arith.constant 0 : index
    %58 = vector.load %arg6[%c0_23, %c0_24] : memref<8x1xf32, #tpu.memory_space<vmem>>, vector<8x1xf32>
    tpu.vector_store %arg6[%c0_23, %c0_24], %57 {strides = array<i32>} : memref<8x1xf32, #tpu.memory_space<vmem>>, vector<8x1xf32>,
    %c0_25 = arith.constant 0 : index
    %c0_26 = arith.constant 0 : index
    %59 = vector.load %arg7[%c0_25, %c0_26] : memref<8x1xf32, #tpu.memory_space<vmem>>, vector<8x1xf32>
    %60 = arith.addf %59, %55 : vector<8x1xf32>
    %c0_27 = arith.constant 0 : index
    %c0_28 = arith.constant 0 : index
    %61 = vector.load %arg7[%c0_27, %c0_28] : memref<8x1xf32, #tpu.memory_space<vmem>>, vector<8x1xf32>
    tpu.vector_store %arg7[%c0_27, %c0_28], %60 {strides = array<i32>} : memref<8x1xf32, #tpu.memory_space<vmem>>, vector<8x1xf32>,
    %c0_i32_29 = arith.constant 0 : i32
    %62 = arith.cmpi eq, %arg1, %c0_i32_29 : i32
    %63 = arith.extui %62 : i1 to i32
    %c0_i32_30 = arith.constant 0 : i32
    %64 = arith.cmpi ne, %63, %c0_i32_30 : i32
    scf.if %64 {
      %c0_31 = arith.constant 0 : index
      %c0_32 = arith.constant 0 : index
      %65 = vector.load %arg6[%c0_31, %c0_32] : memref<8x1xf32, #tpu.memory_space<vmem>>, vector<8x1xf32>
      %66 = vector.shape_cast %65 : vector<8x1xf32> to vector<1x8x1xf32>
      %cst_33 = arith.constant dense<0.000000e+00> : vector<1xf32>
      %67 = vector.multi_reduction <add>, %66, %cst_33 [1, 2] : vector<1x8x1xf32> to vector<1xf32>
      %68 = vector.shape_cast %67 : vector<1xf32> to vector<1x1x1xf32>
      %69 = vector.extract %68[0, 0, 0] : f32 from vector<1x1x1xf32>
      %cst_34 = arith.constant 1.125000e+00 : f32
      %70 = arith.mulf %69, %cst_34 : f32
      %c0_35 = arith.constant 0 : index
      %c0_36 = arith.constant 0 : index
      %71 = vector.load %arg7[%c0_35, %c0_36] : memref<8x1xf32, #tpu.memory_space<vmem>>, vector<8x1xf32>
      %72 = vector.shape_cast %71 : vector<8x1xf32> to vector<1x8x1xf32>
      %cst_37 = arith.constant dense<0.000000e+00> : vector<1xf32>
      %73 = vector.multi_reduction <add>, %72, %cst_37 [1, 2] : vector<1x8x1xf32> to vector<1xf32>
      %74 = vector.shape_cast %73 : vector<1xf32> to vector<1x1x1xf32>
      %75 = vector.extract %74[0, 0, 0] : f32 from vector<1x1x1xf32>
      %cst_38 = arith.constant 7.812500e-03 : f32
      %76 = arith.mulf %75, %cst_38 : f32
      %cst_39 = arith.constant 5.000000e-01 : f32
      %77 = arith.mulf %cst_39, %76 : f32
      %cst_40 = arith.constant 5.000000e-01 : f32
      %78 = arith.mulf %cst_40, %70 : f32
      %79 = arith.addf %77, %78 : f32
      %cst_41 = arith.constant 0.000000e+00 : f32
      %80 = vector.broadcast %cst_41 : f32 to vector<8x128xf32>
      %81 = vector.broadcast %79 : f32 to vector<8x128xf32>
      %82 = arith.addf %81, %80 : vector<8x128xf32>
      %c0_42 = arith.constant 0 : index
      %c0_43 = arith.constant 0 : index
      %83 = vector.load %arg5[%c0_42, %c0_43] : memref<8x128xf32, #tpu.memory_space<vmem>>, vector<8x128xf32>
      tpu.vector_store %arg5[%c0_42, %c0_43], %82 {strides = array<i32>} : memref<8x128xf32, #tpu.memory_space<vmem>>, vector<8x128xf32>,
    } else {
    }
    return
  }
  func.func @transform_0(%arg0: i32, %arg1: i32) -> (i32, i32) {
    %c1_i32 = arith.constant 1 : i32
    %0 = arith.muli %arg0, %c1_i32 : i32
    %1 = arith.addi %0, %arg1 : i32
    %c0_i32 = arith.constant 0 : i32
    %c0_i32_0 = arith.constant 0 : i32
    return %1, %c0_i32 : i32, i32
  }
  func.func @transform_1(%arg0: i32, %arg1: i32) -> (i32, i32) {
    %c1_i32 = arith.constant 1 : i32
    %0 = arith.muli %arg0, %c1_i32 : i32
    %1 = arith.addi %0, %arg1 : i32
    %c0_i32 = arith.constant 0 : i32
    %c0_i32_0 = arith.constant 0 : i32
    return %1, %c0_i32 : i32, i32
  }
  func.func @transform_2(%arg0: i32, %arg1: i32) -> (i32, i32) {
    %c1_i32 = arith.constant 1 : i32
    %0 = arith.muli %arg0, %c1_i32 : i32
    %1 = arith.addi %0, %arg1 : i32
    %c0_i32 = arith.constant 0 : i32
    %c0_i32_0 = arith.constant 0 : i32
    return %1, %c0_i32 : i32, i32
  }
  func.func @transform_3(%arg0: i32, %arg1: i32) -> (i32, i32) {
    %c0_i32 = arith.constant 0 : i32
    %c0_i32_0 = arith.constant 0 : i32
    return %arg0, %c0_i32 : i32, i32
  }
}

</mosaic_0001>

<llo_original>
// kernel: tpu_custom_call.1
$region0: #{tpu_custom_call.1}
  #allocation0 [shape = 'u32[]', space=smem, size = 0x4, offset = 0x4, fixed_abs, tag = 'smem constant byte address 0x4 - core index']
  #allocation1 [shape = 'u32[144,128]{1,0:T(1,128)}', space=vmem, size = 0x12000, scoped, tag = 'internal scratch']
  #allocation2 [shape = 'f32[8,1]{1,0:T(8,128)}', space=vmem, size = 0x1000, scoped, tag = 'scratch operand']
  #allocation3 [shape = 'f32[8,1]{1,0:T(8,128)}', space=vmem, size = 0x1000, scoped, tag = 'scratch operand']
  %s0 = inlined_call_operand.hbm [shape: f32[8,16], index: 0, kind: input, shape index: {}]
  %s1 = inlined_call_operand.hbm [shape: f32[8,16], index: 1, kind: input, shape index: {}]
  %s2 = inlined_call_operand.hbm [shape: f32[8,16], index: 2, kind: input, shape index: {}]
  %s3 = inlined_call_operand.hbm [shape: f32[8,128], index: 3, kind: output, shape index: {}]
  %s4 = sld [smem:[#allocation0]]
  $region42: #{tpu_custom_call.1} parent=0
    _
  %s6 = ssub.s32 1, %s4
  %s7 = scalar_select 0, %s6, %s4
  $region1: #{tpu_custom_call.1} parent=0
    #allocation4 [shape = 'u8[4096]{0}', space=vmem, size = 0x1000, scoped, tag = 'input window, operand 0, single buffered']
    #allocation5 [shape = 's32[1]{0}', space=sflag, size = 0x4, scoped, tag = 'scoped memory for tpu_custom_call.1']
    #allocation6 [shape = 's32[1]{0}', space=sflag, size = 0x4, scoped, tag = 'scoped memory for tpu_custom_call.1']
    #allocation7 [shape = 'u8[4096]{0}', space=vmem, size = 0x1000, scoped, tag = 'input window, operand 1, single buffered']
    #allocation8 [shape = 's32[1]{0}', space=sflag, size = 0x4, scoped, tag = 'scoped memory for tpu_custom_call.1']
    #allocation9 [shape = 'u8[4096]{0}', space=vmem, size = 0x1000, scoped, tag = 'input window, operand 2, single buffered']
    #allocation10 [shape = 'u8[4096]{0}', space=vmem, size = 0x1000, scoped, tag = 'output window, operand 0, single buffered']
    %8 = vsyncpa [#allocation5], 0
    %9 = vsyncpa [#allocation8], 0
    %10 = vsyncpa [#allocation6], 0
    // Predicated region
    $region2: #{tpu_custom_call.1} parent=1 // pred_check
      _
    $region3: #{tpu_custom_call.1} parent=1 // pred_check_branch
      %12 = sbr.rel (0) target = $region5
    $region4: #{tpu_custom_call.1} parent=1 // pred_region
      %s13 = sadd.s32 0, 0
      %s15 = ssub.s32 128, 128
      %16 = vsyncadd [#allocation5], %s15
      %s17 = smul.addr %s13, 128
      %s18 = scalar_lea.hbm %s0, %s17
      %s20 = sshll.u32 [#allocation4], 4
      %s21 = int_to_ptr.vmem [resolvable:$true] %s20
      %23 = dma.hbm_to_vmem [thread:$0]  %s18, 128, %s21, [#allocation5]
    $region5: #{tpu_custom_call.1} parent=1 // pred_fallthru
      _
    // Predicated region
    $region6: #{tpu_custom_call.1} parent=1 // pred_check
      _
    $region7: #{tpu_custom_call.1} parent=1 // pred_check_branch
      %25 = sbr.rel (0) target = $region9
    $region8: #{tpu_custom_call.1} parent=1 // pred_region
      %s26 = sadd.s32 0, 0
      %s28 = ssub.s32 128, 128
      %29 = vsyncadd [#allocation8], %s28
      %s30 = smul.addr %s26, 128
      %s31 = scalar_lea.hbm %s1, %s30
      %s33 = sshll.u32 [#allocation7], 4
      %s34 = int_to_ptr.vmem [resolvable:$true] %s33
      %36 = dma.hbm_to_vmem [thread:$0]  %s31, 128, %s34, [#allocation8]
    $region9: #{tpu_custom_call.1} parent=1 // pred_fallthru
      _
    // Predicated region
    $region10: #{tpu_custom_call.1} parent=1 // pred_check
      _
    $region11: #{tpu_custom_call.1} parent=1 // pred_check_branch
      %38 = sbr.rel (0) target = $region13
    $region12: #{tpu_custom_call.1} parent=1 // pred_region
      %s39 = sadd.s32 0, 0
      %s41 = ssub.s32 128, 128
      %42 = vsyncadd [#allocation8], %s41
      %s43 = smul.addr %s39, 128
      %s44 = scalar_lea.hbm %s2, %s43
      %s46 = sshll.u32 [#allocation9], 4
      %s47 = int_to_ptr.vmem [resolvable:$true] %s46
      %49 = dma.hbm_to_vmem [thread:$0]  %s44, 128, %s47, [#allocation8]
    $region13: #{tpu_custom_call.1} parent=1 // pred_fallthru
      _
    // Predicated region
    $region14: #{tpu_custom_call.1} parent=1 // pred_check
      _
    $region15: #{tpu_custom_call.1} parent=1 // pred_check_branch
      %51 = sbr.rel (0) target = $region17
    $region16: #{tpu_custom_call.1} parent=1 // pred_region
      %52 = dma.done [#allocation5], 128
    $region17: #{tpu_custom_call.1} parent=1 // pred_fallthru
      _
    // Predicated region
    $region18: #{tpu_custom_call.1} parent=1 // pred_check
      _
    $region19: #{tpu_custom_call.1} parent=1 // pred_check_branch
      %54 = sbr.rel (0) target = $region21
    $region20: #{tpu_custom_call.1} parent=1 // pred_region
      %55 = dma.done [#allocation8], 128
    $region21: #{tpu_custom_call.1} parent=1 // pred_fallthru
      _
    // Predicated region
    $region22: #{tpu_custom_call.1} parent=1 // pred_check
      _
    $region23: #{tpu_custom_call.1} parent=1 // pred_check_branch
      %57 = sbr.rel (0) target = $region25
    $region24: #{tpu_custom_call.1} parent=1 // pred_region
      %58 = dma.done [#allocation8], 128
    $region25: #{tpu_custom_call.1} parent=1 // pred_fallthru
      _
    %s59 = sadd.s32 0, 0
    %s60 = sadd.s32 0, 0
    %s61 = sadd.s32 0, 0
    %p62 = scmp.eq.s32.totalorder 0, 0
    // Predicated region
    $region26: #{tpu_custom_call.1} parent=1 // pred_check
      %p63 = pneg %p62
    $region27: #{tpu_custom_call.1} parent=1 // pred_check_branch
      %65 = sbr.rel (%p63) target = $region29
    $region28: #{tpu_custom_call.1} parent=1 // pred_region
      %vm66 = vcmask 7168
      %67 = vst.msk [vmem:[#allocation2] sm:$0xff] %vm66, 0.0
      %68 = vst.msk [vmem:[#allocation3] sm:$0xff] %vm66, 0.0
    $region29: #{tpu_custom_call.1} parent=1 // pred_fallthru
      _
    %v69 = vld [vmem:[#allocation4] sm:$0xff]
    %v70 = vld [vmem:[#allocation7] sm:$0xff]
    %v71 = vld [vmem:[#allocation9] sm:$0xff]
    %v72 = vmul.f32 %v70, 0.33333334
    %vm73 = vcmask 130048
    %v74 = vsel %vm73, %v72, -inf
    %75 = vmax.xlane.f32.xlu0 %v74
    %v76 = vpop.xlane.xlu0 %75
    %v77 = vsub.f32 %v72, %v76
    %v78 = vmul.f32 %v77, 1.442695
    %v79 = vpow.pop %v78
    %v80 = vsel %vm73, %v79, 0.0
    %81 = vadd.xlane.f32.xlu0 %v80
    %v82 = vpop.xlane.xlu0 %81
    %v83 = vmul.f32 %v69, 0.33333334
    %v84 = vsel %vm73, %v83, -inf
    %85 = vmax.xlane.f32.xlu0 %v84
    %v86 = vpop.xlane.xlu0 %85
    %v87 = vsub.f32 %v83, %v86
    %v88 = vmul.f32 %v87, 1.442695
    %v89 = vpow.pop %v88
    %v90 = vsel %vm73, %v89, 0.0
    %91 = vadd.xlane.f32.xlu0 %v90
    %v92 = vpop.xlane.xlu0 %91
    %v93 = vsub.f32 %v77, %v87
    %v94 = vmul.f32 %v79, %v93
    %v95 = vsel %vm73, %v94, 0.0
    %96 = vadd.xlane.f32.xlu0 %v95
    %v97 = vpop.xlane.xlu0 %96
    %v98 = vrcp.pop %v82
    %v99 = vmul.f32 1.0, %v98
    %v100 = vmul.f32 %v97, %v99
    %v101 = vlog2.pop %v92
    %v102 = vmul.f32 %v101, 0.6931472
    %v103 = vlog2.pop %v82
    %v104 = vmul.f32 %v103, 0.6931472
    %v105 = vsub.f32 %v102, %v104
    %v106 = vadd.f32 %v100, %v105
    %v107 = vmax.f32 %v69, 1e-38
    %v108 = vlog2.pop %v107
    %v109 = vmul.f32 %v108, 0.6931472
    %v110 = vmax.f32 %v109, -100.0
    %v111 = vsub.f32 1.0, %v69
    %v112 = vmax.f32 %v111, 1e-38
    %v113 = vlog2.pop %v112
    %v114 = vmul.f32 %v113, 0.6931472
    %v115 = vmax.f32 %v114, -100.0
    %v116 = vmul.f32 %v71, %v110
    %v117 = vsub.f32 1.0, %v71
    %v118 = vmul.f32 %v117, %v115
    %v119 = vadd.f32 %v116, %v118
    %v120 = vsub.f32 0.0, %v119
    %v121 = vsel %vm73, %v120, 0.0
    %122 = vadd.xlane.f32.xlu0 %v121
    %v123 = vpop.xlane.xlu0 %122
    %v124 = vld [vmem:[#allocation2] sm:$0xff]
    %v125 = vadd.f32 %v124, %v106
    %vm126 = vcmask 7168
    %127 = vst.msk [vmem:[#allocation2] sm:$0xff] %vm126, %v125
    %v128 = vld [vmem:[#allocation3] sm:$0xff]
    %v129 = vadd.f32 %v128, %v123
    %130 = vst.msk [vmem:[#allocation3] sm:$0xff] %vm126, %v129
    // Predicated region
    $region30: #{tpu_custom_call.1} parent=1 // pred_check
      %p131 = pneg %p62
    $region31: #{tpu_custom_call.1} parent=1 // pred_check_branch
      %133 = sbr.rel (%p131) target = $region33
    $region32: #{tpu_custom_call.1} parent=1 // pred_region
      %v134 = vld [vmem:[#allocation2] sm:$0xff]
      %v135 = vsel %vm126, %v134, 0.0
      %136 = vadd.xlane.f32.xlu0 %v135
      %v137 = vpop.xlane.xlu0 %136
      %v138 = vrot.slane %v137, 4
      %v139 = vadd.f32 %v137, %v138
      %v140 = vrot.slane %v139, 2
      %v141 = vadd.f32 %v139, %v140
      %v142 = vrot.slane %v141, 1
      %v143 = vadd.f32 %v141, %v142
      %s144 = vtos %v143
      %s145 = smul.f32 %s144, 1.125
      %v146 = vld [vmem:[#allocation3] sm:$0xff]
      %v147 = vsel %vm126, %v146, 0.0
      %148 = vadd.xlane.f32.xlu0 %v147
      %v149 = vpop.xlane.xlu0 %148
      %v150 = vrot.slane %v149, 4
      %v151 = vadd.f32 %v149, %v150
      %v152 = vrot.slane %v151, 2
      %v153 = vadd.f32 %v151, %v152
      %v154 = vrot.slane %v153, 1
      %v155 = vadd.f32 %v153, %v154
      %s156 = vtos %v155
      %s157 = smul.f32 %s156, 0.0078125
      %s158 = smul.f32 %s157, 0.5
      %s159 = smul.f32 %s145, 0.5
      %s160 = sadd.f32 %s158, %s159
      %v161 = vstv %s160
      %v162 = vadd.f32 %v161, 0.0
      %163 = vst [vmem:[#allocation10] sm:$0xff] %v162
    $region33: #{tpu_custom_call.1} parent=1 // pred_fallthru
      _
    // Predicated region
    $region34: #{tpu_custom_call.1} parent=1 // pred_check
      _
    $region35: #{tpu_custom_call.1} parent=1 // pred_check_branch
      %165 = sbr.rel (0) target = $region37
    $region36: #{tpu_custom_call.1} parent=1 // pred_region
      %s167 = ssub.s32 128, 128
      %168 = vsyncadd [#allocation6], %s167
      %s170 = sshll.u32 [#allocation10], 4
      %s171 = int_to_ptr.vmem [resolvable:$true] %s170
      %173 = dma.vmem_to_hbm [thread:$0]  %s171, 128, %s3, [#allocation6]
    $region37: #{tpu_custom_call.1} parent=1 // pred_fallthru
      _
    // Predicated region
    $region38: #{tpu_custom_call.1} parent=1 // pred_check
      _
    $region39: #{tpu_custom_call.1} parent=1 // pred_check_branch
      %175 = sbr.rel (0) target = $region41
    $region40: #{tpu_custom_call.1} parent=1 // pred_region
      %176 = dma.done [#allocation6], 128
    $region41: #{tpu_custom_call.1} parent=1 // pred_fallthru
      _
    %177 = vsyncpa [#allocation5], 1
    %178 = vsyncpa [#allocation8], 1
    %179 = vsyncpa [#allocation6], 1

</llo_original>
